<compile_context>
chip_gen: v7x
topology: tpu7x:2x2x1
jax: 0.10.0
libtpu: 0.0.40
codegen_flags: <defaults>
</compile_context>

<pallas_src>
import jax
import jax.numpy as jnp
from jax.experimental import pallas as pl
from jax.experimental.pallas import tpu as pltpu


def _mish_kernel(x_ref, o_ref):
    # Upcast to f32 for transcendentals (required for bf16 on v5e; harmless f32).
    x = x_ref[...].astype(jnp.float32)

    # mish(x) = x * tanh(softplus(x))
    #         = x * (e^{2x} + 2 e^{x}) / (e^{2x} + 2 e^{x} + 2)
    # Overflow-safe single-exp form with a = exp(-|x|) in (0, 1]:
    #   x >= 0 : num = 1 + 2a         den = num + 2a^2
    #   x <  0 : num = a^2 + 2a       den = num + 2
    a = jnp.exp(-jnp.abs(x))                  # 1 EUP push per element
    a2 = a * a
    pos = x >= 0.0
    num = jnp.where(pos, 1.0 + 2.0 * a, a2 + 2.0 * a)
    den = num + jnp.where(pos, 2.0 * a2, 2.0)

    # Approx EUP reciprocal + two Newton steps (cheap VALU) -> ~f32 precision
    # without a full divide.  den is in [1, 5], well conditioned.
    r = pl.reciprocal(den, approx=True)
    r = r * (2.0 - den * r)
    r = r * (2.0 - den * r)

    o_ref[...] = (x * num * r).astype(o_ref.dtype)


@jax.jit
def mish(x: jax.Array) -> jax.Array:
    """Elementwise Mish via a Pallas TPU kernel. Any shape / float dtype."""
    orig_shape = x.shape
    orig_dtype = x.dtype
    n = x.size
    itemsize = jnp.dtype(orig_dtype).itemsize

    flat = x.reshape(-1)  # contiguous reshape: no copy

    # Pick the widest lane dimension (multiple of 128) that divides n so the
    # slab reshape needs no padding; fall back to 128 + a small tail pad.
    width = 128
    for cand in (2048, 1024, 512, 256):
        if n % cand == 0:
            width = cand
            break

    n_pad = pl.cdiv(n, width) * width
    if n_pad != n:
        # Rare fallback (n not a multiple of 128). mish(0) == 0, so zero-pad is safe.
        flat = jnp.pad(flat, (0, n_pad - n))
    slab = flat.reshape(n_pad // width, width)
    rows = slab.shape[0]

    # Sublane multiple for packed dtypes: 8 (f32), 16 (bf16), 32 (int8/fp8).
    sublane_mult = max(8, 32 // itemsize)

    # Target ~2 MiB blocks: amortizes per-step pipeline overhead while keeping
    # 2 arrays x 2 double-buffers (= 4x block) well under VMEM on all of
    # v5e / v6e / v7x.
    target_block_bytes = 2 * 1024 * 1024
    rows_per_block = max(sublane_mult, target_block_bytes // (width * itemsize))
    rows_per_block = (rows_per_block // sublane_mult) * sublane_mult
    # Either take the whole row dim (always legal) or a sublane-aligned tile;
    # a partial last block is handled by Pallas and is safe for elementwise.
    row_tile = rows if rows <= rows_per_block else rows_per_block

    grid = (pl.cdiv(rows, row_tile),)

    out = pl.pallas_call(
        _mish_kernel,
        out_shape=jax.ShapeDtypeStruct(slab.shape, orig_dtype),
        grid_spec=pltpu.PrefetchScalarGridSpec(
            num_scalar_prefetch=0,
            grid=grid,
            in_specs=[pl.BlockSpec((row_tile, width), lambda i: (i, 0))],
            out_specs=pl.BlockSpec((row_tile, width), lambda i: (i, 0)),
        ),
        compiler_params=pltpu.CompilerParams(
            dimension_semantics=("parallel",),        # megacore-shardable on v7x
            vmem_limit_bytes=32 * 1024 * 1024,        # headroom for 4x 2 MiB tiles
        ),
        cost_estimate=pl.CostEstimate(
            flops=10 * n_pad,
            transcendentals=n_pad,
            bytes_accessed=2 * n_pad * itemsize,
        ),
    )(slab)

    flat_out = out.reshape(-1)
    if n_pad != n:
        flat_out = flat_out[:n]
    return flat_out.reshape(orig_shape)


def mish_reference(x: jax.Array) -> jax.Array:
    return x * jnp.tanh(jax.nn.softplus(x))


if __name__ == "__main__":
    key = jax.random.PRNGKey(0)

    # NCHW, matching PyTorch conv-style inputs: batch=2, channels=4, spatial=16x16.
    x = jax.random.normal(key, (2, 4, 16, 16), dtype=jnp.float32)
    y = jax.block_until_ready(mish(x))
    y_ref = mish_reference(x)
    assert y.shape == x.shape and y.dtype == x.dtype
    assert jnp.allclose(y, y_ref, atol=1e-5, rtol=1e-5)

    # Ragged size (not a multiple of 128) exercises the tail-pad fallback and
    # a wider |x| range for the stable single-exp formulation.
    x2 = 4.0 * jax.random.normal(jax.random.PRNGKey(0), (3, 5, 7, 11), dtype=jnp.float32)
    y2 = jax.block_until_ready(mish(x2))
    assert jnp.allclose(y2, mish_reference(x2), atol=1e-5, rtol=1e-5)

    print("KERNEL_OK")
</pallas_src>

<mosaic_0001>
module attributes {stable_mosaic.version = 11 : i64} {
  func.func @_mish_kernel(%arg0: i32, %arg1: memref<1x2048xf32, #tpu.memory_space<vmem>>, %arg2: memref<1x2048xf32, #tpu.memory_space<vmem>>) attributes {dimension_semantics = [#tpu.dimension_semantics<parallel>], iteration_bounds = array<i64: 1>, scalar_prefetch = 0 : i64, scratch_operands = 0 : i64, tpu.core_type = #tpu.core_type<tc>, window_params = [{transform_indices = @transform_0, window_bounds = array<i64: 1, 2048>}, {transform_indices = @transform_1, window_bounds = array<i64: 1, 2048>}]} {
    %c0 = arith.constant 0 : index
    %c0_0 = arith.constant 0 : index
    %0 = vector.load %arg1[%c0, %c0_0] : memref<1x2048xf32, #tpu.memory_space<vmem>>, vector<1x2048xf32>
    %1 = math.absf %0 : vector<1x2048xf32>
    %cst = arith.constant 0.000000e+00 : f32
    %2 = vector.broadcast %cst : f32 to vector<1x2048xf32>
    %3 = arith.subf %2, %1 : vector<1x2048xf32>
    %4 = math.exp %3 : vector<1x2048xf32>
    %5 = arith.mulf %4, %4 : vector<1x2048xf32>
    %cst_1 = arith.constant 0.000000e+00 : f32
    %6 = vector.broadcast %cst_1 : f32 to vector<1x2048xf32>
    %7 = arith.cmpf oge, %0, %6 : vector<1x2048xf32>
    %cst_2 = arith.constant 2.000000e+00 : f32
    %8 = vector.broadcast %cst_2 : f32 to vector<1x2048xf32>
    %9 = arith.mulf %8, %4 : vector<1x2048xf32>
    %cst_3 = arith.constant 1.000000e+00 : f32
    %10 = vector.broadcast %cst_3 : f32 to vector<1x2048xf32>
    %11 = arith.addf %10, %9 : vector<1x2048xf32>
    %cst_4 = arith.constant 2.000000e+00 : f32
    %12 = vector.broadcast %cst_4 : f32 to vector<1x2048xf32>
    %13 = arith.mulf %12, %4 : vector<1x2048xf32>
    %14 = arith.addf %5, %13 : vector<1x2048xf32>
    %15 = arith.select %7, %11, %14 : vector<1x2048xi1>, vector<1x2048xf32>
    %cst_5 = arith.constant 2.000000e+00 : f32
    %16 = vector.broadcast %cst_5 : f32 to vector<1x2048xf32>
    %17 = arith.mulf %16, %5 : vector<1x2048xf32>
    %cst_6 = arith.constant 2.000000e+00 : f32
    %18 = vector.broadcast %cst_6 : f32 to vector<1x2048xf32>
    %19 = arith.select %7, %17, %18 : vector<1x2048xi1>, vector<1x2048xf32>
    %20 = arith.addf %15, %19 : vector<1x2048xf32>
    %21 = tpu.reciprocal %20 {approx = true} : vector<1x2048xf32> -> vector<1x2048xf32>
    %22 = arith.mulf %20, %21 : vector<1x2048xf32>
    %cst_7 = arith.constant 2.000000e+00 : f32
    %23 = vector.broadcast %cst_7 : f32 to vector<1x2048xf32>
    %24 = arith.subf %23, %22 : vector<1x2048xf32>
    %25 = arith.mulf %21, %24 : vector<1x2048xf32>
    %26 = arith.mulf %20, %25 : vector<1x2048xf32>
    %cst_8 = arith.constant 2.000000e+00 : f32
    %27 = vector.broadcast %cst_8 : f32 to vector<1x2048xf32>
    %28 = arith.subf %27, %26 : vector<1x2048xf32>
    %29 = arith.mulf %25, %28 : vector<1x2048xf32>
    %30 = arith.mulf %0, %15 : vector<1x2048xf32>
    %31 = arith.mulf %30, %29 : vector<1x2048xf32>
    %c0_9 = arith.constant 0 : index
    %c0_10 = arith.constant 0 : index
    %32 = vector.load %arg2[%c0_9, %c0_10] : memref<1x2048xf32, #tpu.memory_space<vmem>>, vector<1x2048xf32>
    tpu.vector_store %arg2[%c0_9, %c0_10], %31 {strides = array<i32>} : memref<1x2048xf32, #tpu.memory_space<vmem>>, vector<1x2048xf32>,
    return
  }
  func.func @transform_0(%arg0: i32) -> (i32, i32) {
    %c0_i32 = arith.constant 0 : i32
    %c0_i32_0 = arith.constant 0 : i32
    return %arg0, %c0_i32 : i32, i32
  }
  func.func @transform_1(%arg0: i32) -> (i32, i32) {
    %c0_i32 = arith.constant 0 : i32
    %c0_i32_0 = arith.constant 0 : i32
    return %arg0, %c0_i32 : i32, i32
  }
}

</mosaic_0001>

<llo_original>
// kernel: mish.1
$region0: #{mish.1}
  #allocation0 [shape = 'u32[]', space=smem, size = 0x4, offset = 0x4, fixed_abs, tag = 'smem constant byte address 0x4 - core index']
  #allocation1 [shape = 'u32[144,128]{1,0:T(1,128)}', space=vmem, size = 0x12000, scoped, tag = 'internal scratch']
  %s0 = inlined_call_operand.vmem [shape: f32[1,2048], index: 0, kind: input, shape index: {}]
  %s1 = inlined_call_operand.vmem [shape: f32[1,2048], index: 1, kind: output, shape index: {}]
  %s2 = sld [smem:[#allocation0]]
  $region14: #{mish.1} parent=0
    _
  %s4 = ssub.s32 1, %s2
  %s5 = scalar_select 0, %s4, %s2
  // Predicated region
  $region2: #{mish.1} parent=0 // pred_check
    _
  $region3: #{mish.1} parent=0 // pred_check_branch
    %7 = sbr.rel (0) target = $region5
  $region4: #{mish.1} parent=0 // pred_region
    _
  $region5: #{mish.1} parent=0 // pred_fallthru
    _
  %v8 = vld [vmem:[%s0] sm:$0xff]
  %v9 = vld [vmem:[%s0 + $0x8] sm:$0xff]
  %v10 = vand.u32 2147483647, %v8
  %v11 = vand.u32 2147483647, %v9
  %v12 = vsub.f32 0.0, %v10
  %v13 = vsub.f32 0.0, %v11
  %v14 = vmul.f32 %v12, 1.442695
  %v15 = vpow.pop %v14
  %v16 = vmul.f32 %v13, 1.442695
  %v17 = vpow.pop %v16
  %v18 = vmul.f32 %v15, %v15
  %v19 = vmul.f32 %v17, %v17
  %vm20 = vcmp.ge.f32.partialorder %v8, 0.0
  %vm21 = vcmp.ge.f32.partialorder %v9, 0.0
  %v22 = vmul.f32 %v15, 2.0
  %v23 = vmul.f32 %v17, 2.0
  %v24 = vadd.f32 %v22, 1.0
  %v25 = vadd.f32 %v23, 1.0
  %v26 = vadd.f32 %v18, %v22
  %v27 = vadd.f32 %v19, %v23
  %v28 = vsel %vm20, %v24, %v26
  %v29 = vsel %vm21, %v25, %v27
  %v30 = vmul.f32 %v18, 2.0
  %v31 = vmul.f32 %v19, 2.0
  %v32 = vsel %vm20, %v30, 2.0
  %v33 = vsel %vm21, %v31, 2.0
  %v34 = vadd.f32 %v28, %v32
  %v35 = vadd.f32 %v29, %v33
  %v36 = vrcp.pop %v34
  %v37 = vrcp.pop %v35
  %v38 = vmul.f32 %v34, %v36
  %v39 = vmul.f32 %v35, %v37
  %v40 = vsub.f32 2.0, %v38
  %v41 = vsub.f32 2.0, %v39
  %v42 = vmul.f32 %v36, %v40
  %v43 = vmul.f32 %v37, %v41
  %v44 = vmul.f32 %v34, %v42
  %v45 = vmul.f32 %v35, %v43
  %v46 = vsub.f32 2.0, %v44
  %v47 = vsub.f32 2.0, %v45
  %v48 = vmul.f32 %v42, %v46
  %v49 = vmul.f32 %v43, %v47
  %v50 = vmul.f32 %v8, %v28
  %v51 = vmul.f32 %v9, %v29
  %v52 = vmul.f32 %v50, %v48
  %v53 = vmul.f32 %v51, %v49
  %54 = vst [vmem:[%s1] sm:$0xff] %v52
  %55 = vst [vmem:[%s1 + $0x8] sm:$0xff] %v53
  // Predicated region
  $region6: #{mish.1} parent=0 // pred_check
    _
  $region7: #{mish.1} parent=0 // pred_check_branch
    %57 = sbr.rel (0) target = $region9
  $region8: #{mish.1} parent=0 // pred_region
    _
  $region9: #{mish.1} parent=0 // pred_fallthru
    _
  // Predicated region
  $region10: #{mish.1} parent=0 // pred_check
    _
  $region11: #{mish.1} parent=0 // pred_check_branch
    %59 = sbr.rel (0) target = $region13
  $region12: #{mish.1} parent=0 // pred_region
    _
  $region13: #{mish.1} parent=0 // pred_fallthru
    _

</llo_original>
